<compile_context>
chip_gen: v6e
topology: v6e:2x2x1
jax: 0.10.0
libtpu: 0.0.40
codegen_flags: <defaults>
</compile_context>

<pallas_src>
import numpy as np

import jax
import jax.numpy as jnp
from jax.experimental import pallas as pl
from jax.experimental.pallas import tpu as pltpu


# Below this total size a single DMA is issued; above it, the copy is split
# into up to _MAX_INFLIGHT_DMAS chunks along the leading dimension.
_CHUNK_THRESHOLD_BYTES = 8 * 1024 * 1024
_MAX_INFLIGHT_DMAS = 4


def _chunk_bounds(n_rows, n_chunks):
    """Static (start, size) ranges splitting n_rows into <= n_chunks parts."""
    base, rem = divmod(n_rows, n_chunks)
    bounds, start = [], 0
    for c in range(n_chunks):
        size = base + (1 if c < rem else 0)
        if size > 0:
            bounds.append((start, size))
        start += size
    return tuple(bounds)


def _make_copy_kernel(bounds):
    """Kernel issuing one HBM->HBM DMA per (static) chunk, all in flight."""

    def kernel(x_ref, o_ref, sems):
        if len(bounds) == 1:
            cp = pltpu.make_async_copy(x_ref, o_ref, sems.at[0])
            cp.start()
            cp.wait()
            return
        copies = []
        for c, (start, size) in enumerate(bounds):
            sl = pl.ds(start, size)
            cp = pltpu.make_async_copy(x_ref.at[sl], o_ref.at[sl], sems.at[c])
            cp.start()
            copies.append(cp)
        for cp in copies:
            cp.wait()

    return kernel


def _dma_copy(x):
    """Materialized identity copy of `x` as chunked HBM->HBM DMA."""
    n_bytes = int(x.size) * int(np.dtype(x.dtype).itemsize)
    rows = x.shape[0]
    if n_bytes >= _CHUNK_THRESHOLD_BYTES and rows >= 2:
        n_chunks = min(_MAX_INFLIGHT_DMAS, rows)
    else:
        n_chunks = 1
    bounds = _chunk_bounds(rows, n_chunks)

    return pl.pallas_call(
        _make_copy_kernel(bounds),
        out_shape=jax.ShapeDtypeStruct(x.shape, x.dtype),
        in_specs=[pl.BlockSpec(memory_space=pl.ANY)],
        out_specs=pl.BlockSpec(memory_space=pl.ANY),
        scratch_shapes=[pltpu.SemaphoreType.DMA((len(bounds),))],
        cost_estimate=pl.CostEstimate(
            flops=0, transcendentals=0, bytes_accessed=2 * n_bytes),
    )(x)


@jax.jit
def skip_forward(states):
    """Identity forward pass of `Skip` (materialized copy, non-donated input)."""
    if states.size == 0:
        return states  # nothing to copy
    x = states
    if x.ndim == 0:
        x = x.reshape(1)  # DMA wants at least one dimension
    out = _dma_copy(x)
    return out.reshape(states.shape)


def skip_forward_inplace(states):
    """Zero-HBM-traffic identity for donated / temporary inputs.

    The output buffer aliases the input buffer and the kernel body is a pure
    ordering no-op, so no bytes move.  If the input cannot actually be
    donated, XLA falls back to a single defensive copy (same cost as
    `skip_forward`).  Intended for use inside larger jitted programs where
    `states` is a consumable temporary.
    """

    def kernel(x_ref, o_ref):
        del x_ref  # data is already in the aliased output buffer
        pltpu.touch(o_ref)  # ordering dependency only; no data movement

    return pl.pallas_call(
        kernel,
        out_shape=jax.ShapeDtypeStruct(states.shape, states.dtype),
        in_specs=[pl.BlockSpec(memory_space=pl.ANY)],
        out_specs=pl.BlockSpec(memory_space=pl.ANY),
        input_output_aliases={0: 0},
    )(states)


if __name__ == "__main__":
    key = jax.random.PRNGKey(0)

    # Small NCHW-style input consistent with typical usage of this module.
    x = jax.random.normal(key, (2, 4, 16, 16), dtype=jnp.float32)
    y = jax.block_until_ready(skip_forward(x))
    assert y.shape == x.shape
    assert y.dtype == x.dtype
    assert bool(jnp.all(y == x))

    # Odd-sized tensor (not a multiple of 128 elements): handled directly by
    # the HBM->HBM DMA path — no padding / un-padding round trips.
    x2 = jax.random.normal(jax.random.PRNGKey(0), (3, 5, 7), dtype=jnp.float32)
    y2 = jax.block_until_ready(skip_forward(x2))
    assert y2.shape == x2.shape
    assert y2.dtype == x2.dtype
    assert bool(jnp.all(y2 == x2))

    print("KERNEL_OK")
</pallas_src>

<mosaic_0001>
module attributes {stable_mosaic.version = 11 : i64} {
  func.func @kernel(%arg0: memref<2x4x16x16xf32, #tpu.memory_space<any>>, %arg1: memref<2x4x16x16xf32, #tpu.memory_space<any>>, %arg2: memref<1x!tpu.dma_semaphore, #tpu.memory_space<semaphore_mem>>) attributes {dimension_semantics = [], scalar_prefetch = 0 : i64, scratch_operands = 1 : i64, tpu.core_type = #tpu.core_type<tc>} {
    %c0_i32 = arith.constant 0 : i32
    %0 = tpu.memref_slice %arg2[%c0_i32] : memref<1x!tpu.dma_semaphore, #tpu.memory_space<semaphore_mem>> -> memref<1x!tpu.dma_semaphore, #tpu.memory_space<semaphore_mem>>
    %1 = tpu.memref_squeeze %0 : memref<1x!tpu.dma_semaphore, #tpu.memory_space<semaphore_mem>> -> memref<!tpu.dma_semaphore, #tpu.memory_space<semaphore_mem>>
    tpu.enqueue_dma source(%arg0 : memref<2x4x16x16xf32, #tpu.memory_space<any>>) target(%arg1 : memref<2x4x16x16xf32, #tpu.memory_space<any>>) target_semaphore(%1 : memref<!tpu.dma_semaphore, #tpu.memory_space<semaphore_mem>>)
    %c0_i32_0 = arith.constant 0 : i32
    %2 = tpu.memref_slice %arg2[%c0_i32_0] : memref<1x!tpu.dma_semaphore, #tpu.memory_space<semaphore_mem>> -> memref<1x!tpu.dma_semaphore, #tpu.memory_space<semaphore_mem>>
    %3 = tpu.memref_squeeze %2 : memref<1x!tpu.dma_semaphore, #tpu.memory_space<semaphore_mem>> -> memref<!tpu.dma_semaphore, #tpu.memory_space<semaphore_mem>>
    tpu.wait_dma2 semaphore(%3 : memref<!tpu.dma_semaphore, #tpu.memory_space<semaphore_mem>>) src(%arg0 : memref<2x4x16x16xf32, #tpu.memory_space<any>>) dst(%arg1 : memref<2x4x16x16xf32, #tpu.memory_space<any>>)
    return
  }
}

</mosaic_0001>

<llo_original>
// kernel: skip_forward.1
$region0: #{skip_forward.1}
  #allocation0 [shape = 'u32[]', space=smem, size = 0x4, offset = 0x4, fixed_abs, tag = 'smem constant byte address 0x4 - core index']
  #allocation1 [shape = 'u32[144,128]{1,0:T(1,128)}', space=vmem, size = 0x12000, scoped, tag = 'internal scratch']
  #allocation2 [shape = 's32[1]{0}', space=sflag, size = 0x4, scoped, tag = 'scratch operand']
  #allocation3 [shape = 's32[]', space=sflag, size = 0x4, offset = 0, fixed_abs, tag = 'sflag constant byte address 0x0 - dummy sync flag']
  #allocation4 [shape = 'u32[0]{0}', space=smem, size = 0, offset = 0, fixed_abs, tag = 'smem constant byte address 0x0 - null']
  %s0 = inlined_call_operand.hbm [shape: f32[2,4,16,16], index: 0, kind: input, shape index: {}]
  %s1 = inlined_call_operand.hbm [shape: f32[2,4,16,16], index: 1, kind: output, shape index: {}]
  %s2 = sld [smem:[#allocation0]]
  $region2: #{skip_forward.1} parent=0
    _
  %s4 = ssub.s32 1, %s2
  %s5 = scalar_select 0, %s4, %s2
  %s7 = sshll.u32 1, 14
  %s8 = sxor.u32 4294967295, %s7
  %12 = dma.general %s0, 2048, %s1, [#allocation2], 131072, [#allocation4], 0, 0
  %s13 = smul.u32 2, 4
  %s14 = smul.u32 %s13, 16
  %s15 = smul.u32 %s14, 1
  %s16 = sshll.u32 %s15, 4
  %17 = dma.done [#allocation2], %s16
  %18 = vsyncmov [#allocation2]
  %s19 = vpop.sfrf %18
  %p20 = scmp.eq.s32.totalorder %s19, 0
  %p21 = pneg %p20
  %23 = shalt.err (%p21)

</llo_original>
